<compile_context>
chip_gen: v7x
topology: tpu7x:2x2x1
jax: 0.10.0
libtpu: 0.0.40
codegen_flags: <defaults>
</compile_context>

<pallas_src>
import functools

import jax
import jax.numpy as jnp
import numpy as np
from jax.experimental import pallas as pl
from jax.experimental.pallas import tpu as pltpu

_LANE = 128


def _round_up(a, b):
    return ((a + b - 1) // b) * b


def _cdiv(a, b):
    return (a + b - 1) // b


def _choose_batch_tile(N, cap=8192):
    """Pick (num_tiles, tn, N_pad).

    Derive the tile count first, then tn, so padding waste stays below ~128
    lanes per tile; force >=2 grid steps once N >= 256 (>=4 for large N) so the
    "parallel" grid axis gives both v7x TensorCores work.  Zero cost on
    v5e/v6e (single TC): per-step overhead (~0.35 us) stays amortized because
    tiles never shrink below 128 (>=512 once we force 4 steps).
    """
    n_ceil = _round_up(max(N, 1), _LANE)
    g = _cdiv(n_ceil, cap)              # enough tiles to respect the per-tile cap
    if n_ceil >= 2 * _LANE:             # >=2 steps -> both v7x TCs get a tile
        g = max(g, 2)
    if n_ceil >= 4 * 512:               # large batches: >=4 steps, tiles stay >=512
        g = max(g, 4)
    tn = _round_up(_cdiv(n_ceil, g), _LANE)
    g = _cdiv(n_ceil, tn)
    return g, tn, g * tn


def _mlp_kernel(x_ref, w1_ref, wmid_ref, w5_ref, bh_ref, b5_ref, o_ref):
    """Fused 5-layer MLP on one (D_in, tn) batch tile (batch on lanes).

    x_ref   : (D_in, tn)      input coordinates, batch on the lane axis
    w1_ref  : (H, D_in)       layer-1 weight (PyTorch (out, in) layout)
    wmid_ref: (3, H, H)       stacked W2, W3, W4
    w5_ref  : (H, D_out)      layer-5 weight, stored transposed (in, out)
    bh_ref  : (4, H, 1)       stacked b1..b4 as columns
    b5_ref  : (D_out, 1)      output bias
    o_ref   : (D_out, tn)     output, batch on the lane axis
    """
    f32 = jnp.float32
    bf16 = jnp.bfloat16

    x = x_ref[...].astype(f32)            # (D_in, tn)
    w1 = w1_ref[...].astype(f32)          # (H, D_in)
    w5 = w5_ref[...].astype(f32)          # (H, D_out)

    D_in, tn = x.shape
    H = w1.shape[0]
    D_out = w5.shape[1]

    # ---- layer 1: contraction over tiny K = D_in -> VPU broadcast-FMAs,
    #      no (nearly empty) MXU pass.  Stays f32 (exact).
    z1 = jnp.broadcast_to(bh_ref[0].astype(f32), (H, tn))
    for d in range(D_in):                 # D_in is static -> fully unrolled
        z1 = z1 + w1[:, d:d + 1] * x[d:d + 1, :]
    y1 = jnp.tanh(z1)

    # ---- layers 2..4: the only real MXU work (H x H), batch on lanes.
    # bf16 operands + f32 accumulation: native single-pass MXU on all
    # generations (f32 x f32 would lower as multi-pass bf16 emulation).
    # tanh / bias / residual remain f32 (v5e has no bf16 VPU/EUP).
    def hidden_layer(layer_idx, y_in):
        z = jnp.dot(wmid_ref[layer_idx].astype(bf16), y_in.astype(bf16),
                    preferred_element_type=f32)
        return jnp.tanh(z + bh_ref[layer_idx + 1].astype(f32))

    y2 = hidden_layer(0, y1)
    y3 = hidden_layer(1, y2) + y1
    y4 = hidden_layer(2, y3) + y2

    # ---- layer 5 (f32)
    b5 = b5_ref[...].astype(f32)          # (D_out, 1)
    if D_out == 1:
        # Single output row: VPU multiply + sublane reduce instead of a
        # 1-row MXU pass.
        y = jnp.sum(w5 * y4, axis=0, keepdims=True) + b5          # (1, tn)
    else:
        y = jax.lax.dot_general(
            w5, y4, dimension_numbers=(((0,), (0,)), ((), ())),
            preferred_element_type=f32) + b5                       # (D_out, tn)

    o_ref[...] = y.astype(o_ref.dtype)


@functools.partial(jax.jit, static_argnames=("tn",))
def multilayer_net_forward(x, params, *, tn=None):
    """x: (N, D_in).  params: W1..W5 in PyTorch (out, in) layout, b1..b5 1-D."""
    N, D_in = x.shape
    D_out = params["W5"].shape[0]

    if tn is None:
        num_tiles, tn, N_pad = _choose_batch_tile(N)
    else:
        assert tn % _LANE == 0, "batch tile must be a multiple of the 128-lane width"
        N_pad = _round_up(N, tn)
        num_tiles = N_pad // tn

    # Batch on the lane axis; zero-pad arbitrary N up to the tiled extent.
    # (Padded lanes compute tanh of biases and are sliced off below.)
    x_t = jnp.pad(x.T, ((0, 0), (0, N_pad - N)))                   # (D_in, N_pad)

    # Coalesce the constant operands into a few VMEM-resident blocks.
    w1 = params["W1"]                                              # (H, D_in)
    wmid = jnp.stack([params["W2"], params["W3"], params["W4"]])   # (3, H, H)
    w5_col = params["W5"].T                                        # (H, D_out)
    bh = jnp.stack([params["b1"], params["b2"],
                    params["b3"], params["b4"]])[..., None]        # (4, H, 1)
    b5 = params["b5"][:, None]                                     # (D_out, 1)

    def const_spec(shape):
        nd = len(shape)
        return pl.BlockSpec(shape, lambda i, _nd=nd: (0,) * _nd)

    out_t = pl.pallas_call(
        _mlp_kernel,
        out_shape=jax.ShapeDtypeStruct((D_out, N_pad), x.dtype),
        grid_spec=pltpu.PrefetchScalarGridSpec(
            num_scalar_prefetch=0,
            grid=(num_tiles,),
            in_specs=[
                pl.BlockSpec((D_in, tn), lambda i: (0, i)),   # x tile (batch on lanes)
                const_spec(w1.shape),
                const_spec(wmid.shape),
                const_spec(w5_col.shape),
                const_spec(bh.shape),
                const_spec(b5.shape),
            ],
            out_specs=pl.BlockSpec((D_out, tn), lambda i: (0, i)),
        ),
        compiler_params=pltpu.CompilerParams(
            dimension_semantics=("parallel",)),
    )(x_t, w1, wmid, w5_col, bh, b5)

    return out_t[:, :N].T                                          # (N, D_out)


def init_params(key, D_in, H, D_out):
    """Mirror the PyTorch __init__ distributions:
       weights ~ N(0, sqrt(2/(fan_in+fan_out))) in (out, in) layout,
       biases ~ N(0, 1) as 1-D vectors."""
    keys = jax.random.split(key, 10)
    dims = [(H, D_in), (H, H), (H, H), (H, H), (D_out, H)]
    params = {}
    for idx, (fout, fin) in enumerate(dims, start=1):
        std = np.sqrt(2.0 / (fin + fout))
        params[f"W{idx}"] = std * jax.random.normal(
            keys[2 * (idx - 1)], (fout, fin), dtype=jnp.float32)
        params[f"b{idx}"] = jax.random.normal(
            keys[2 * (idx - 1) + 1], (fout,), dtype=jnp.float32)
    return params


def reference_forward(x, p):
    """Pure-f32 JAX reference of the PyTorch forward."""
    y1 = jnp.tanh(x @ p["W1"].T + p["b1"])
    y2 = jnp.tanh(y1 @ p["W2"].T + p["b2"])
    y3 = jnp.tanh(y2 @ p["W3"].T + p["b3"]) + y1
    y4 = jnp.tanh(y3 @ p["W4"].T + p["b4"]) + y2
    return y4 @ p["W5"].T + p["b5"]


def reference_forward_mixed(x, p):
    """Reference that mimics the kernel's numerics: bf16 operands with f32
    accumulation for the H x H layers, everything else f32."""
    bf16 = jnp.bfloat16

    def hid(y, w):
        return jnp.dot(y.astype(bf16), w.T.astype(bf16),
                       preferred_element_type=jnp.float32)

    y1 = jnp.tanh(x @ p["W1"].T + p["b1"])
    y2 = jnp.tanh(hid(y1, p["W2"]) + p["b2"])
    y3 = jnp.tanh(hid(y2, p["W3"]) + p["b3"]) + y1
    y4 = jnp.tanh(hid(y3, p["W4"]) + p["b4"]) + y2
    return y4 @ p["W5"].T + p["b5"]


if __name__ == "__main__":
    # Small shapes consistent with the PINN usage: 2-D coordinates, 32 hidden, 1 output.
    # N is deliberately not a multiple of 8/128 to exercise the padding path.
    D_in, H, D_out = 2, 32, 1
    N = 300

    key = jax.random.PRNGKey(0)
    k_x, k_p = jax.random.split(key)
    x = jax.random.normal(k_x, (N, D_in), dtype=jnp.float32)
    params = init_params(k_p, D_in, H, D_out)

    y = multilayer_net_forward(x, params)
    y = jax.block_until_ready(y)

    # Tight check against a reference with matching (bf16-operand) numerics.
    y_ref_mixed = reference_forward_mixed(x, params)
    np.testing.assert_allclose(np.asarray(y), np.asarray(y_ref_mixed),
                               rtol=2e-3, atol=2e-3)

    # Looser sanity check against the pure-f32 PyTorch-equivalent reference
    # (the bf16 hidden-layer operands trade the old 1e-5 tolerance for ~1e-2).
    y_ref_f32 = reference_forward(x, params)
    np.testing.assert_allclose(np.asarray(y), np.asarray(y_ref_f32),
                               rtol=5e-2, atol=5e-2)

    print("KERNEL_OK")
</pallas_src>

<mosaic_0001>
module attributes {stable_mosaic.version = 11 : i64} {
  func.func @_mlp_kernel(%arg0: i32, %arg1: memref<2x256xf32, #tpu.memory_space<vmem>>, %arg2: memref<32x2xf32, #tpu.memory_space<vmem>>, %arg3: memref<3x32x32xf32, #tpu.memory_space<vmem>>, %arg4: memref<32x1xf32, #tpu.memory_space<vmem>>, %arg5: memref<4x32x1xf32, #tpu.memory_space<vmem>>, %arg6: memref<1x1xf32, #tpu.memory_space<vmem>>, %arg7: memref<1x256xf32, #tpu.memory_space<vmem>>) attributes {dimension_semantics = [#tpu.dimension_semantics<parallel>], iteration_bounds = array<i64: 2>, scalar_prefetch = 0 : i64, scratch_operands = 0 : i64, tpu.core_type = #tpu.core_type<tc>, window_params = [{transform_indices = @transform_0, window_bounds = array<i64: 2, 256>}, {pipeline_mode = #tpu.pipeline_mode<synchronous>, transform_indices = @transform_1, window_bounds = array<i64: 32, 2>}, {pipeline_mode = #tpu.pipeline_mode<synchronous>, transform_indices = @transform_2, window_bounds = array<i64: 3, 32, 32>}, {pipeline_mode = #tpu.pipeline_mode<synchronous>, transform_indices = @transform_3, window_bounds = array<i64: 32, 1>}, {pipeline_mode = #tpu.pipeline_mode<synchronous>, transform_indices = @transform_4, window_bounds = array<i64: 4, 32, 1>}, {pipeline_mode = #tpu.pipeline_mode<synchronous>, transform_indices = @transform_5, window_bounds = array<i64: 1, 1>}, {transform_indices = @transform_6, window_bounds = array<i64: 1, 256>}]} {
    %c0 = arith.constant 0 : index
    %c0_0 = arith.constant 0 : index
    %0 = vector.load %arg1[%c0, %c0_0] : memref<2x256xf32, #tpu.memory_space<vmem>>, vector<2x256xf32>
    %c0_1 = arith.constant 0 : index
    %c0_2 = arith.constant 0 : index
    %1 = vector.load %arg2[%c0_1, %c0_2] : memref<32x2xf32, #tpu.memory_space<vmem>>, vector<32x2xf32>
    %c0_3 = arith.constant 0 : index
    %c0_4 = arith.constant 0 : index
    %2 = vector.load %arg4[%c0_3, %c0_4] : memref<32x1xf32, #tpu.memory_space<vmem>>, vector<32x1xf32>
    %c0_5 = arith.constant 0 : index
    %c0_6 = arith.constant 0 : index
    %c0_7 = arith.constant 0 : index
    %3 = vector.load %arg5[%c0_5, %c0_6, %c0_7] : memref<4x32x1xf32, #tpu.memory_space<vmem>>, vector<1x32x1xf32>
    %4 = vector.shape_cast %3 : vector<1x32x1xf32> to vector<32x1xf32>
    %5 = vector.shape_cast %4 : vector<32x1xf32> to vector<32x1xf32>
    %6 = vector.broadcast %5 : vector<32x1xf32> to vector<32x256xf32>
    %7 = vector.extract_strided_slice %1 {offsets = [0, 0], sizes = [32, 1], strides = [1, 1]} : vector<32x2xf32> to vector<32x1xf32>
    %8 = vector.extract_strided_slice %0 {offsets = [0, 0], sizes = [1, 256], strides = [1, 1]} : vector<2x256xf32> to vector<1x256xf32>
    %9 = vector.broadcast %7 : vector<32x1xf32> to vector<32x256xf32>
    %10 = vector.broadcast %8 : vector<1x256xf32> to vector<32x256xf32>
    %11 = arith.mulf %9, %10 : vector<32x256xf32>
    %12 = arith.addf %6, %11 : vector<32x256xf32>
    %13 = vector.extract_strided_slice %1 {offsets = [0, 1], sizes = [32, 1], strides = [1, 1]} : vector<32x2xf32> to vector<32x1xf32>
    %14 = vector.extract_strided_slice %0 {offsets = [1, 0], sizes = [1, 256], strides = [1, 1]} : vector<2x256xf32> to vector<1x256xf32>
    %15 = vector.broadcast %13 : vector<32x1xf32> to vector<32x256xf32>
    %16 = vector.broadcast %14 : vector<1x256xf32> to vector<32x256xf32>
    %17 = arith.mulf %15, %16 : vector<32x256xf32>
    %18 = arith.addf %12, %17 : vector<32x256xf32>
    %19 = math.tanh %18 : vector<32x256xf32>
    %c0_8 = arith.constant 0 : index
    %c0_9 = arith.constant 0 : index
    %c0_10 = arith.constant 0 : index
    %20 = vector.load %arg3[%c0_8, %c0_9, %c0_10] : memref<3x32x32xf32, #tpu.memory_space<vmem>>, vector<1x32x32xf32>
    %21 = vector.shape_cast %20 : vector<1x32x32xf32> to vector<32x32xf32>
    %22 = arith.truncf %21 : vector<32x32xf32> to vector<32x32xbf16>
    %23 = arith.truncf %19 : vector<32x256xf32> to vector<32x256xbf16>
    %cst = arith.constant dense<0.000000e+00> : vector<32x256xf32>
    %24 = tpu.matmul %22, %23, %cst {dimension_numbers = #tpu.dot_dimension_numbers<[1], [0], [0], [1], [0, 0, 1, 1], [], []>} : vector<32x32xbf16>, vector<32x256xbf16>, vector<32x256xf32> -> vector<32x256xf32>
    %c1 = arith.constant 1 : index
    %c0_11 = arith.constant 0 : index
    %c0_12 = arith.constant 0 : index
    %25 = vector.load %arg5[%c1, %c0_11, %c0_12] : memref<4x32x1xf32, #tpu.memory_space<vmem>>, vector<1x32x1xf32>
    %26 = vector.shape_cast %25 : vector<1x32x1xf32> to vector<32x1xf32>
    %27 = vector.broadcast %26 : vector<32x1xf32> to vector<32x256xf32>
    %28 = arith.addf %24, %27 : vector<32x256xf32>
    %29 = math.tanh %28 : vector<32x256xf32>
    %c1_13 = arith.constant 1 : index
    %c0_14 = arith.constant 0 : index
    %c0_15 = arith.constant 0 : index
    %30 = vector.load %arg3[%c1_13, %c0_14, %c0_15] : memref<3x32x32xf32, #tpu.memory_space<vmem>>, vector<1x32x32xf32>
    %31 = vector.shape_cast %30 : vector<1x32x32xf32> to vector<32x32xf32>
    %32 = arith.truncf %31 : vector<32x32xf32> to vector<32x32xbf16>
    %33 = arith.truncf %29 : vector<32x256xf32> to vector<32x256xbf16>
    %cst_16 = arith.constant dense<0.000000e+00> : vector<32x256xf32>
    %34 = tpu.matmul %32, %33, %cst_16 {dimension_numbers = #tpu.dot_dimension_numbers<[1], [0], [0], [1], [0, 0, 1, 1], [], []>} : vector<32x32xbf16>, vector<32x256xbf16>, vector<32x256xf32> -> vector<32x256xf32>
    %c2 = arith.constant 2 : index
    %c0_17 = arith.constant 0 : index
    %c0_18 = arith.constant 0 : index
    %35 = vector.load %arg5[%c2, %c0_17, %c0_18] : memref<4x32x1xf32, #tpu.memory_space<vmem>>, vector<1x32x1xf32>
    %36 = vector.shape_cast %35 : vector<1x32x1xf32> to vector<32x1xf32>
    %37 = vector.broadcast %36 : vector<32x1xf32> to vector<32x256xf32>
    %38 = arith.addf %34, %37 : vector<32x256xf32>
    %39 = math.tanh %38 : vector<32x256xf32>
    %40 = arith.addf %39, %19 : vector<32x256xf32>
    %c2_19 = arith.constant 2 : index
    %c0_20 = arith.constant 0 : index
    %c0_21 = arith.constant 0 : index
    %41 = vector.load %arg3[%c2_19, %c0_20, %c0_21] : memref<3x32x32xf32, #tpu.memory_space<vmem>>, vector<1x32x32xf32>
    %42 = vector.shape_cast %41 : vector<1x32x32xf32> to vector<32x32xf32>
    %43 = arith.truncf %42 : vector<32x32xf32> to vector<32x32xbf16>
    %44 = arith.truncf %40 : vector<32x256xf32> to vector<32x256xbf16>
    %cst_22 = arith.constant dense<0.000000e+00> : vector<32x256xf32>
    %45 = tpu.matmul %43, %44, %cst_22 {dimension_numbers = #tpu.dot_dimension_numbers<[1], [0], [0], [1], [0, 0, 1, 1], [], []>} : vector<32x32xbf16>, vector<32x256xbf16>, vector<32x256xf32> -> vector<32x256xf32>
    %c3 = arith.constant 3 : index
    %c0_23 = arith.constant 0 : index
    %c0_24 = arith.constant 0 : index
    %46 = vector.load %arg5[%c3, %c0_23, %c0_24] : memref<4x32x1xf32, #tpu.memory_space<vmem>>, vector<1x32x1xf32>
    %47 = vector.shape_cast %46 : vector<1x32x1xf32> to vector<32x1xf32>
    %48 = vector.broadcast %47 : vector<32x1xf32> to vector<32x256xf32>
    %49 = arith.addf %45, %48 : vector<32x256xf32>
    %50 = math.tanh %49 : vector<32x256xf32>
    %51 = arith.addf %50, %29 : vector<32x256xf32>
    %c0_25 = arith.constant 0 : index
    %c0_26 = arith.constant 0 : index
    %52 = vector.load %arg6[%c0_25, %c0_26] : memref<1x1xf32, #tpu.memory_space<vmem>>, vector<1x1xf32>
    %53 = vector.broadcast %2 : vector<32x1xf32> to vector<32x256xf32>
    %54 = arith.mulf %53, %51 : vector<32x256xf32>
    %cst_27 = arith.constant dense<0.000000e+00> : vector<256xf32>
    %55 = vector.multi_reduction <add>, %54, %cst_27 [0] : vector<32x256xf32> to vector<256xf32>
    %56 = vector.shape_cast %55 : vector<256xf32> to vector<1x256xf32>
    %57 = vector.broadcast %52 : vector<1x1xf32> to vector<1x256xf32>
    %58 = arith.addf %56, %57 : vector<1x256xf32>
    %c0_28 = arith.constant 0 : index
    %c0_29 = arith.constant 0 : index
    %59 = vector.load %arg7[%c0_28, %c0_29] : memref<1x256xf32, #tpu.memory_space<vmem>>, vector<1x256xf32>
    tpu.vector_store %arg7[%c0_28, %c0_29], %58 {strides = array<i32>} : memref<1x256xf32, #tpu.memory_space<vmem>>, vector<1x256xf32>,
    return
  }
  func.func @transform_0(%arg0: i32) -> (i32, i32) {
    %c0_i32 = arith.constant 0 : i32
    %c0_i32_0 = arith.constant 0 : i32
    return %c0_i32, %arg0 : i32, i32
  }
  func.func @transform_1(%arg0: i32) -> (i32, i32) {
    %c0_i32 = arith.constant 0 : i32
    %c0_i32_0 = arith.constant 0 : i32
    %c0_i32_1 = arith.constant 0 : i32
    return %c0_i32, %c0_i32_0 : i32, i32
  }
  func.func @transform_2(%arg0: i32) -> (i32, i32, i32) {
    %c0_i32 = arith.constant 0 : i32
    %c0_i32_0 = arith.constant 0 : i32
    %c0_i32_1 = arith.constant 0 : i32
    %c0_i32_2 = arith.constant 0 : i32
    return %c0_i32, %c0_i32_0, %c0_i32_1 : i32, i32, i32
  }
  func.func @transform_3(%arg0: i32) -> (i32, i32) {
    %c0_i32 = arith.constant 0 : i32
    %c0_i32_0 = arith.constant 0 : i32
    %c0_i32_1 = arith.constant 0 : i32
    return %c0_i32, %c0_i32_0 : i32, i32
  }
  func.func @transform_4(%arg0: i32) -> (i32, i32, i32) {
    %c0_i32 = arith.constant 0 : i32
    %c0_i32_0 = arith.constant 0 : i32
    %c0_i32_1 = arith.constant 0 : i32
    %c0_i32_2 = arith.constant 0 : i32
    return %c0_i32, %c0_i32_0, %c0_i32_1 : i32, i32, i32
  }
  func.func @transform_5(%arg0: i32) -> (i32, i32) {
    %c0_i32 = arith.constant 0 : i32
    %c0_i32_0 = arith.constant 0 : i32
    %c0_i32_1 = arith.constant 0 : i32
    return %c0_i32, %c0_i32_0 : i32, i32
  }
  func.func @transform_6(%arg0: i32) -> (i32, i32) {
    %c0_i32 = arith.constant 0 : i32
    %c0_i32_0 = arith.constant 0 : i32
    return %c0_i32, %arg0 : i32, i32
  }
}

</mosaic_0001>

<llo_original>
// kernel: multilayer_net_forward.1
$region0: #{multilayer_net_forward.1}
  #allocation0 [shape = 'u32[]', space=smem, size = 0x4, offset = 0x4, fixed_abs, tag = 'smem constant byte address 0x4 - core index']
  #allocation1 [shape = 'u32[144,128]{1,0:T(1,128)}', space=vmem, size = 0x12000, scoped, tag = 'internal scratch']
  #allocation2 [shape = 'f32[1,1]{1,0:T(1,128)S(1)}', space=vmem, size = 0x200, scoped, tag = 'scoped memory for multilayer_net_forward.1']
  %s0 = inlined_call_operand.vmem [shape: f32[2,512], index: 0, kind: input, shape index: {}]
  %s1 = inlined_call_operand.vmem [shape: f32[32,2], index: 1, kind: input, shape index: {}]
  %s2 = inlined_call_operand.vmem [shape: f32[3,32,32], index: 2, kind: input, shape index: {}]
  %s3 = inlined_call_operand.vmem [shape: f32[32,1], index: 3, kind: input, shape index: {}]
  %s4 = inlined_call_operand.vmem [shape: f32[4,32,1], index: 4, kind: input, shape index: {}]
  %s5 = inlined_call_operand.<no memory space> [shape: f32[1,1], index: 5, kind: input, shape index: {}]
  %s6 = inlined_call_operand.vmem [shape: f32[1,512], index: 6, kind: output, shape index: {}]
  %s7 = sld [smem:[#allocation0]]
  $region57: #{multilayer_net_forward.1} parent=0
    _
  %s9 = ssub.s32 1, %s7
  %s10 = scalar_select 0, %s9, %s7
  %v11 = vstv %s5
  %12 = vst [vmem:[#allocation2] sm:$0x1] %v11
  loop: start=0, step=1, limit=4
  $region2: #{multilayer_net_forward.1} parent=0 // loop_pre_header
    _
  $region3: #{multilayer_net_forward.1} parent=0 // loop_header
    %s14 = sphi 0, %s18
    %p15 = scmp.ge.s32.totalorder %s14, 4
    %s24 = sphi 0, %s26
    %s27 = sphi 0, %s24
    %s28 = sphi 0, %s27
    %s44 = sphi 0, %s28
    %s48 = sphi 0, %s48
    %s50 = sphi 0, %s48
    %s51 = sphi 0, %s50
    %s65 = sphi 0, %s51
    %s69 = sphi 0, %s69
    %s71 = sphi 0, %s69
    %s72 = sphi 0, %s71
    %s86 = sphi 0, %s72
    %s90 = sphi 0, %s90
    %s92 = sphi 0, %s90
    %s93 = sphi 0, %s92
    %s107 = sphi 0, %s93
    %s111 = sphi 0, %s111
    %s113 = sphi 0, %s111
    %s114 = sphi 0, %s113
    %s128 = sphi 0, %s114
    %s132 = sphi 0, %s132
    %s134 = sphi 0, %s132
    %s135 = sphi 0, %s134
    %s149 = sphi 0, %s135
    %s155 = sphi 0, %s157
    %s158 = sphi 0, %s155
    %s159 = sphi 0, %s158
    %s175 = sphi 0, %s159
  $region4: #{multilayer_net_forward.1} parent=0 // loop_header_branch
    %17 = sbr.rel (%p15) target = $region8
  $region5: #{multilayer_net_forward.1} parent=0 // loop_body
    %s19 = ssub.s32 %s14, 1
    %s20 = ssub.s32 %s14, 2
    %s21 = sadd.s32 %s14, 1
    %s22 = ssub.s32 %s14, %s21
    %p23 = scmp.eq.s32.totalorder %s22, 0
    %s25 = sadd.s32 %s24, 1
    %s26 = scalar_select %p23, %s24, %s25
    %p29 = pneg %p23
    %p30 = scmp.eq.s32.totalorder %s14, 1
    %p31 = por %p29, %p30
    %p32 = scmp.ne.s32.totalorder %s24, %s27
    %p33 = scmp.eq.s32.totalorder %s14, 0
    %p34 = por %p32, %p33
    %p35 = scmp.ne.s32.totalorder %s24, %s27
    %p36 = scmp.eq.s32.totalorder %s19, 1
    %p37 = por %p35, %p36
    %p38 = scmp.ne.s32.totalorder %s27, %s28
    %p39 = scmp.eq.s32.totalorder %s19, 0
    %p40 = por %p38, %p39
    %p41 = scmp.ne.s32.totalorder %s27, %s28
    %p42 = scmp.eq.s32.totalorder %s20, 1
    %p43 = por %p41, %p42
    %p45 = scmp.ne.s32.totalorder %s28, %s44
    %p46 = scmp.eq.s32.totalorder %s20, 0
    %p47 = por %p45, %p46
    %s49 = sadd.s32 %s48, 1
    %p52 = scmp.eq.s32.totalorder %s14, 1
    %p53 = scmp.ne.s32.totalorder %s48, %s50
    %p54 = scmp.eq.s32.totalorder %s14, 0
    %p55 = por %p53, %p54
    %p56 = scmp.ne.s32.totalorder %s48, %s50
    %p57 = scmp.eq.s32.totalorder %s19, 1
    %p58 = por %p56, %p57
    %p59 = scmp.ne.s32.totalorder %s50, %s51
    %p60 = scmp.eq.s32.totalorder %s19, 0
    %p61 = por %p59, %p60
    %p62 = scmp.ne.s32.totalorder %s50, %s51
    %p63 = scmp.eq.s32.totalorder %s20, 1
    %p64 = por %p62, %p63
    %p66 = scmp.ne.s32.totalorder %s51, %s65
    %p67 = scmp.eq.s32.totalorder %s20, 0
    %p68 = por %p66, %p67
    %s70 = sadd.s32 %s69, 1
    %p73 = scmp.eq.s32.totalorder %s14, 1
    %p74 = scmp.ne.s32.totalorder %s69, %s71
    %p75 = scmp.eq.s32.totalorder %s14, 0
    %p76 = por %p74, %p75
    %p77 = scmp.ne.s32.totalorder %s69, %s71
    %p78 = scmp.eq.s32.totalorder %s19, 1
    %p79 = por %p77, %p78
    %p80 = scmp.ne.s32.totalorder %s71, %s72
    %p81 = scmp.eq.s32.totalorder %s19, 0
    %p82 = por %p80, %p81
    %p83 = scmp.ne.s32.totalorder %s71, %s72
    %p84 = scmp.eq.s32.totalorder %s20, 1
    %p85 = por %p83, %p84
    %p87 = scmp.ne.s32.totalorder %s72, %s86
    %p88 = scmp.eq.s32.totalorder %s20, 0
    %p89 = por %p87, %p88
    %s91 = sadd.s32 %s90, 1
    %p94 = scmp.eq.s32.totalorder %s14, 1
    %p95 = scmp.ne.s32.totalorder %s90, %s92
    %p96 = scmp.eq.s32.totalorder %s14, 0
    %p97 = por %p95, %p96
    %p98 = scmp.ne.s32.totalorder %s90, %s92
    %p99 = scmp.eq.s32.totalorder %s19, 1
    %p100 = por %p98, %p99
    %p101 = scmp.ne.s32.totalorder %s92, %s93
    %p102 = scmp.eq.s32.totalorder %s19, 0
    %p103 = por %p101, %p102
    %p104 = scmp.ne.s32.totalorder %s92, %s93
    %p105 = scmp.eq.s32.totalorder %s20, 1
    %p106 = por %p104, %p105
    %p108 = scmp.ne.s32.totalorder %s93, %s107
    %p109 = scmp.eq.s32.totalorder %s20, 0
    %p110 = por %p108, %p109
    %s112 = sadd.s32 %s111, 1
    %p115 = scmp.eq.s32.totalorder %s14, 1
    %p116 = scmp.ne.s32.totalorder %s111, %s113
    %p117 = scmp.eq.s32.totalorder %s14, 0
    %p118 = por %p116, %p117
    %p119 = scmp.ne.s32.totalorder %s111, %s113
    %p120 = scmp.eq.s32.totalorder %s19, 1
    %p121 = por %p119, %p120
    %p122 = scmp.ne.s32.totalorder %s113, %s114
    %p123 = scmp.eq.s32.totalorder %s19, 0
    %p124 = por %p122, %p123
    %p125 = scmp.ne.s32.totalorder %s113, %s114
    %p126 = scmp.eq.s32.totalorder %s20, 1
    %p127 = por %p125, %p126
    %p129 = scmp.ne.s32.totalorder %s114, %s128
    %p130 = scmp.eq.s32.totalorder %s20, 0
    %p131 = por %p129, %p130
    %s133 = sadd.s32 %s132, 1
    %p136 = scmp.eq.s32.totalorder %s14, 1
    %p137 = scmp.ne.s32.totalorder %s132, %s134
    %p138 = scmp.eq.s32.totalorder %s14, 0
    %p139 = por %p137, %p138
    %p140 = scmp.ne.s32.totalorder %s132, %s134
    %p141 = scmp.eq.s32.totalorder %s19, 1
    %p142 = por %p140, %p141
    %p143 = scmp.ne.s32.totalorder %s134, %s135
    %p144 = scmp.eq.s32.totalorder %s19, 0
    %p145 = por %p143, %p144
    %p146 = scmp.ne.s32.totalorder %s134, %s135
    %p147 = scmp.eq.s32.totalorder %s20, 1
    %p148 = por %p146, %p147
    %p150 = scmp.ne.s32.totalorder %s135, %s149
    %p151 = scmp.eq.s32.totalorder %s20, 0
    %p152 = por %p150, %p151
    %s153 = ssub.s32 %s14, %s21
    %p154 = scmp.eq.s32.totalorder %s153, 0
    %s156 = sadd.s32 %s155, 1
    %s157 = scalar_select %p154, %s155, %s156
    %p160 = pneg %p154
    %p161 = scmp.eq.s32.totalorder %s14, 1
    %p162 = por %p160, %p161
    %p163 = scmp.ne.s32.totalorder %s155, %s158
    %p164 = scmp.eq.s32.totalorder %s14, 0
    %p165 = por %p163, %p164
    %p166 = scmp.ne.s32.totalorder %s155, %s158
    %p167 = scmp.eq.s32.totalorder %s19, 1
    %p168 = por %p166, %p167
    %p169 = scmp.ne.s32.totalorder %s158, %s159
    %p170 = scmp.eq.s32.totalorder %s19, 0
    %p171 = por %p169, %p170
    %p172 = scmp.ne.s32.totalorder %s158, %s159
    %p173 = scmp.eq.s32.totalorder %s20, 1
    %p174 = por %p172, %p173
    %p176 = scmp.ne.s32.totalorder %s159, %s175
    %p177 = scmp.eq.s32.totalorder %s20, 0
    %p178 = por %p176, %p177
    %p179 = scmp.le.s32.totalorder 1, %s14
    %p180 = scmp.lt.s32.totalorder %s14, 3
    %p181 = pnand %p179, %p180
    %p182 = pneg %p181
    // Predicated region
    $region9: #{multilayer_net_forward.1} parent=5 // pred_check
      _
    $region10: #{multilayer_net_forward.1} parent=5 // pred_check_branch
      %184 = sbr.rel (%p181) target = $region12
    $region11: #{multilayer_net_forward.1} parent=5 // pred_region
      %s185 = ssub.s32 %s14, 1
      // Predicated region
      $region13: #{multilayer_net_forward.1} parent=11 // pred_check
        %p186 = pneg %p61
      $region14: #{multilayer_net_forward.1} parent=11 // pred_check_branch
        %188 = sbr.rel (%p186) target = $region16
      $region15: #{multilayer_net_forward.1} parent=11 // pred_region
        _
      $region16: #{multilayer_net_forward.1} parent=11 // pred_fallthru
        _
      // Predicated region
      $region17: #{multilayer_net_forward.1} parent=11 // pred_check
        %p189 = pneg %p82
      $region18: #{multilayer_net_forward.1} parent=11 // pred_check_branch
        %191 = sbr.rel (%p189) target = $region20
      $region19: #{multilayer_net_forward.1} parent=11 // pred_region
        _
      $region20: #{multilayer_net_forward.1} parent=11 // pred_fallthru
        _
      // Predicated region
      $region21: #{multilayer_net_forward.1} parent=11 // pred_check
        %p192 = pneg %p103
      $region22: #{multilayer_net_forward.1} parent=11 // pred_check_branch
        %194 = sbr.rel (%p192) target = $region24
      $region23: #{multilayer_net_forward.1} parent=11 // pred_region
        _
      $region24: #{multilayer_net_forward.1} parent=11 // pred_fallthru
        _
      // Predicated region
      $region25: #{multilayer_net_forward.1} parent=11 // pred_check
        %p195 = pneg %p124
      $region26: #{multilayer_net_forward.1} parent=11 // pred_check_branch
        %197 = sbr.rel (%p195) target = $region28
      $region27: #{multilayer_net_forward.1} parent=11 // pred_region
        _
      $region28: #{multilayer_net_forward.1} parent=11 // pred_fallthru
        _
      // Predicated region
      $region29: #{multilayer_net_forward.1} parent=11 // pred_check
        %p198 = pneg %p145
      $region30: #{multilayer_net_forward.1} parent=11 // pred_check_branch
        %200 = sbr.rel (%p198) target = $region32
      $region31: #{multilayer_net_forward.1} parent=11 // pred_region
        _
      $region32: #{multilayer_net_forward.1} parent=11 // pred_fallthru
        _
    $region12: #{multilayer_net_forward.1} parent=5 // pred_fallthru
      _
    %p201 = scmp.lt.s32.totalorder %s14, 2
    // Predicated region
    $region33: #{multilayer_net_forward.1} parent=5 // pred_check
      %p202 = pneg %p201
    $region34: #{multilayer_net_forward.1} parent=5 // pred_check_branch
      %204 = sbr.rel (%p202) target = $region36
    $region35: #{multilayer_net_forward.1} parent=5 // pred_region
      // Predicated region
      $region37: #{multilayer_net_forward.1} parent=35 // pred_check
        %p205 = pneg %p34
      $region38: #{multilayer_net_forward.1} parent=35 // pred_check_branch
        %207 = sbr.rel (%p205) target = $region40
      $region39: #{multilayer_net_forward.1} parent=35 // pred_region
        %s208 = smul.u32 2, %s14
        %p209 = scmp.lt.s32.totalorder %s208, 3
        %s210 = scalar_select %p209, %s208, 3
        %s211 = smul.addr %s210, 2
        %s212 = scalar_lea.vmem %s0, %s211
        %s213 = smul.u32 2, %s14
      $region40: #{multilayer_net_forward.1} parent=35 // pred_fallthru
        _
    $region36: #{multilayer_net_forward.1} parent=5 // pred_fallthru
      _
    %p214 = scmp.le.s32.totalorder 1, %s14
    %p215 = scmp.lt.s32.totalorder %s14, 3
    %p216 = pnand %p214, %p215
    %p217 = pneg %p216
    // Predicated region
    $region41: #{multilayer_net_forward.1} parent=5 // pred_check
      _
    $region42: #{multilayer_net_forward.1} parent=5 // pred_check_branch
      %219 = sbr.rel (%p216) target = $region44
    $region43: #{multilayer_net_forward.1} parent=5 // pred_region
      %s220 = ssub.s32 %s14, 1
      %s221 = smul.u32 2, %s19
      %p222 = scmp.lt.s32.totalorder %s221, 3
      %s223 = scalar_select %p222, %s221, 3
      %s224 = smul.addr %s223, 2
      %s225 = scalar_lea.vmem %s0, %s224
      %p226 = pneg %p40
      %p227 = pneg %p37
      %p228 = pneg %p61
      %p229 = pneg %p58
      %p230 = pneg %p82
      %p231 = pneg %p79
      %p232 = pneg %p103
      %p233 = pneg %p100
      %p234 = pneg %p124
      %p235 = pneg %p121
      %p236 = pneg %p145
      %p237 = pneg %p142
      %p238 = pneg %p171
      %p239 = pneg %p168
      %s240 = smul.u32 2, %s19
      %p241 = scmp.lt.s32.totalorder %s240, 3
      %s242 = scalar_select %p241, %s240, 3
      %s243 = scalar_lea.vmem %s6, %s242
      %s244 = smul.u32 2, %s19
      %p245 = scmp.lt.s32.totalorder %s244, 3
      %s246 = scalar_select %p245, %s244, 3
      %s247 = smul.addr %s246, 2
      %s248 = scalar_lea.vmem %s0, %s247
      %s249 = smul.u32 2, %s19
      %s250 = smul.u32 2, %s19
      %p251 = scmp.lt.s32.totalorder %s250, 3
      %s252 = scalar_select %p251, %s250, 3
      %s253 = scalar_lea.vmem %s6, %s252
      %s254 = smul.u32 2, %s19
      %v256 = vld [vmem:[%s248] sm:$0xf]
      %v257 = vld [vmem:[%s1] sm:$0xff]
      %v258 = vld [vmem:[%s1 + $0x8] sm:$0xff]
      %v259 = vld [vmem:[%s1 + $0x10] sm:$0xff]
      %v260 = vld [vmem:[%s1 + $0x18] sm:$0xff]
      %v261 = vld [vmem:[%s3] sm:$0xff]
      %v262 = vld [vmem:[%s3 + $0x8] sm:$0xff]
      %v263 = vld [vmem:[%s3 + $0x10] sm:$0xff]
      %v264 = vld [vmem:[%s3 + $0x18] sm:$0xff]
      %v265 = vld [vmem:[%s4] sm:$0xff]
      %v266 = vld [vmem:[%s4 + $0x8] sm:$0xff]
      %v267 = vld [vmem:[%s4 + $0x10] sm:$0xff]
      %v268 = vld [vmem:[%s4 + $0x18] sm:$0xff]
      %270 = vset.pattern.permute.xlu0 0
      %271 = vperm.xlu0 %270, %v265
      %v272 = vpop.permute.xlu0 %271
      %275 = vset.pattern.permute.xlu0 0
      %276 = vperm.xlu0 %275, %v266
      %v277 = vpop.permute.xlu0 %276
      %280 = vset.pattern.permute.xlu0 0
      %281 = vperm.xlu0 %280, %v267
      %v282 = vpop.permute.xlu0 %281
      %285 = vset.pattern.permute.xlu0 0
      %286 = vperm.xlu0 %285, %v268
      %v287 = vpop.permute.xlu0 %286
      %290 = vset.pattern.permute.xlu0 0
      %291 = vperm.xlu0 %290, %v257
      %v292 = vpop.permute.xlu0 %291
      %295 = vset.pattern.permute.xlu0 0
      %296 = vperm.xlu0 %295, %v258
      %v297 = vpop.permute.xlu0 %296
      %300 = vset.pattern.permute.xlu0 0
      %301 = vperm.xlu0 %300, %v259
      %v302 = vpop.permute.xlu0 %301
      %305 = vset.pattern.permute.xlu0 0
      %306 = vperm.xlu0 %305, %v260
      %v307 = vpop.permute.xlu0 %306
      %v310 = vlaneseq
      %v311 = vshrl.u32 %v310, 7
      %v312 = vsub.s32 0, %v311
      %v313 = vrot.slane %v256, %v312
      %v314 = vlaneseq
      %v315 = vshrl.u32 %v314, 7
      %v316 = vsub.s32 2, %v315
      %v317 = vrot.slane %v256, %v316
      %v320 = vlaneseq
      %v321 = vshrl.u32 %v320, 7
      %v322 = vsub.s32 0, %v321
      %v323 = vrot.slane %v313, %v322
      %v324 = vlaneseq
      %v325 = vshrl.u32 %v324, 7
      %v326 = vsub.s32 0, %v325
      %v327 = vrot.slane %v317, %v326
      %v328 = vmul.f32 %v292, %v323
      %v329 = vmul.f32 %v292, %v327
      %v330 = vmul.f32 %v297, %v323
      %v331 = vmul.f32 %v297, %v327
      %v332 = vmul.f32 %v302, %v323
      %v333 = vmul.f32 %v302, %v327
      %v334 = vmul.f32 %v307, %v323
      %v335 = vmul.f32 %v307, %v327
      %v336 = vadd.f32 %v272, %v328
      %v337 = vadd.f32 %v272, %v329
      %v338 = vadd.f32 %v277, %v330
      %v339 = vadd.f32 %v277, %v331
      %v340 = vadd.f32 %v282, %v332
      %v341 = vadd.f32 %v282, %v333
      %v342 = vadd.f32 %v287, %v334
      %v343 = vadd.f32 %v287, %v335
      %344 = vset.pattern.permute.xlu0 1
      %345 = vperm.xlu0 %344, %v257
      %v346 = vpop.permute.xlu0 %345
      %348 = vset.pattern.permute.xlu0 1
      %349 = vperm.xlu0 %348, %v258
      %v350 = vpop.permute.xlu0 %349
      %352 = vset.pattern.permute.xlu0 1
      %353 = vperm.xlu0 %352, %v259
      %v354 = vpop.permute.xlu0 %353
      %356 = vset.pattern.permute.xlu0 1
      %357 = vperm.xlu0 %356, %v260
      %v358 = vpop.permute.xlu0 %357
      %v360 = vlaneseq
      %v361 = vshrl.u32 %v360, 7
      %v362 = vsub.s32 1, %v361
      %v363 = vrot.slane %v256, %v362
      %v364 = vlaneseq
      %v365 = vshrl.u32 %v364, 7
      %v366 = vsub.s32 3, %v365
      %v367 = vrot.slane %v256, %v366
      %v370 = vlaneseq
      %v371 = vshrl.u32 %v370, 7
      %v372 = vsub.s32 1, %v371
      %v373 = vrot.slane %v363, %v372
      %v374 = vlaneseq
      %v375 = vshrl.u32 %v374, 7
      %v376 = vsub.s32 1, %v375
      %v377 = vrot.slane %v367, %v376
      %v378 = vmul.f32 %v346, %v373
      %v379 = vmul.f32 %v346, %v377
      %v380 = vmul.f32 %v350, %v373
      %v381 = vmul.f32 %v350, %v377
      %v382 = vmul.f32 %v354, %v373
      %v383 = vmul.f32 %v354, %v377
      %v384 = vmul.f32 %v358, %v373
      %v385 = vmul.f32 %v358, %v377
      %v386 = vadd.f32 %v336, %v378
      %v387 = vadd.f32 %v337, %v379
      %v388 = vadd.f32 %v338, %v380
      %v389 = vadd.f32 %v339, %v381
      %v390 = vadd.f32 %v340, %v382
      %v391 = vadd.f32 %v341, %v383
      %v392 = vadd.f32 %v342, %v384
      %v393 = vadd.f32 %v343, %v385
      %v394 = vtanh.pop %v386
      %v395 = vtanh.pop %v387
      %v396 = vtanh.pop %v388
      %v397 = vtanh.pop %v389
      %v398 = vtanh.pop %v390
      %v399 = vtanh.pop %v391
      %v400 = vtanh.pop %v392
      %v401 = vtanh.pop %v393
      %v402 = vld [vmem:[%s2] sm:$0xff]
      %v403 = vld [vmem:[%s2 + $0x8] sm:$0xff]
      %v404 = vld [vmem:[%s2 + $0x10] sm:$0xff]
      %v405 = vld [vmem:[%s2 + $0x18] sm:$0xff]
      %v406 = vpack.c.bf16 %v403, %v402
      %v407 = vpack.c.bf16 %v405, %v404
      %v408 = vpack.c.bf16 %v396, %v394
      %v409 = vpack.c.bf16 %v397, %v395
      %v410 = vpack.c.bf16 %v400, %v398
      %v411 = vpack.c.bf16 %v401, %v399
      %s412 = scalar_lea.vmem %s4, 32
      %v413 = vld [vmem:[%s412] sm:$0xff]
      %v414 = vld [vmem:[%s412 + $0x8] sm:$0xff]
      %v415 = vld [vmem:[%s412 + $0x10] sm:$0xff]
      %v416 = vld [vmem:[%s412 + $0x18] sm:$0xff]
      %418 = vset.pattern.permute.xlu0 0
      %419 = vperm.xlu0 %418, %v413
      %v420 = vpop.permute.xlu0 %419
      %423 = vset.pattern.permute.xlu0 0
      %424 = vperm.xlu0 %423, %v414
      %v425 = vpop.permute.xlu0 %424
      %428 = vset.pattern.permute.xlu0 0
      %429 = vperm.xlu0 %428, %v415
      %v430 = vpop.permute.xlu0 %429
      %433 = vset.pattern.permute.xlu0 0
      %434 = vperm.xlu0 %433, %v416
      %v435 = vpop.permute.xlu0 %434
      %vm437 = vcmask 261120
      %v439 = vsel %vm437, %v406, 0
      %v442 = vsel %vm437, %v407, 0
      %444 = vmatprep.subr.bf16.mxu0 %v409
      %445 = vmatpush1.bf16.msra.mxu0 %v408
      %446 = vmatprep.subr.bf16.mxu0 %v411
      %447 = vmatpush1.bf16.msra.mxu0 %v410
      %448 = vmatprep.subr.bf16.mxu0 0
      %449 = vmatpush1.bf16.msra.mxu0 0
      %450 = vmatprep.subr.bf16.mxu0 0
      %451 = vmatpush1.bf16.msra.mxu0 0
      %452 = vmatprep.subr.bf16.mxu0 0
      %453 = vmatpush1.bf16.msra.mxu0 0
      %454 = vmatprep.subr.bf16.mxu0 0
      %455 = vmatpush1.bf16.msra.mxu0 0
      %456 = vmatprep.subr.bf16.mxu0 0
      %457 = vmatpush1.bf16.msra.mxu0 0
      %458 = vmatprep.subr.bf16.mxu0 0
      %459 = vmatpush1.bf16.msra.mxu0 0
      %460 = vmatprep.subr.bf16.mxu0 0
      %461 = vmatpush1.bf16.msra.mxu0 0
      %462 = vmatprep.subr.bf16.mxu0 0
      %463 = vmatpush1.bf16.msra.mxu0 0
      %464 = vmatprep.subr.bf16.mxu0 0
      %465 = vmatpush1.bf16.msra.mxu0 0
      %466 = vmatprep.subr.bf16.mxu0 0
      %467 = vmatpush1.bf16.msra.mxu0 0
      %468 = vmatprep.subr.bf16.mxu0 0
      %469 = vmatpush1.bf16.msra.mxu0 0
      %470 = vmatprep.subr.bf16.mxu0 0
      %471 = vmatpush1.bf16.msra.mxu0 0
      %472 = vmatprep.subr.bf16.mxu0 0
      %473 = vmatpush1.bf16.msra.mxu0 0
      %474 = vmatprep.subr.bf16.mxu0 0
      %475 = vmatpush1.bf16.msra.mxu0 0
      %476 = vmatprep.mubr.bf16.mxu0 0
      %477 = vmatmul.mubr.bf16.gmra.mrb[0].mxu0 %v439
      %v478 = vpop.f32.mrb[0].mxu0
      %v479 = vadd.f32 %v420, %v478
      %v480 = vpop.f32.mrb[0].mxu0
      %v481 = vadd.f32 %v420, %v480
      %v482 = vpop.f32.mrb[0].mxu0
      %v483 = vadd.f32 %v425, %v482
      %v484 = vpop.f32.mrb[0].mxu0
      %v485 = vadd.f32 %v425, %v484
      %486 = vmatprep.mubr.bf16.mxu0 0
      %487 = vmatmul.mubr.bf16.gmra.mrb[0].mxu0 %v442
      %v488 = vpop.f32.mrb[0].mxu0
      %v489 = vadd.f32 %v430, %v488
      %v490 = vpop.f32.mrb[0].mxu0
      %v491 = vadd.f32 %v430, %v490
      %v492 = vpop.f32.mrb[0].mxu0
      %v493 = vadd.f32 %v435, %v492
      %v494 = vpop.f32.mrb[0].mxu0
      %v495 = vadd.f32 %v435, %v494
      %496 = vdwg.mxu0
      %v497 = vtanh.pop %v479
      %v498 = vtanh.pop %v481
      %v499 = vtanh.pop %v483
      %v500 = vtanh.pop %v485
      %v501 = vtanh.pop %v489
      %v502 = vtanh.pop %v491
      %v503 = vtanh.pop %v493
      %v504 = vtanh.pop %v495
      %s505 = scalar_lea.vmem %s2, 32
      %v506 = vld [vmem:[%s505] sm:$0xff]
      %v507 = vld [vmem:[%s505 + $0x8] sm:$0xff]
      %v508 = vld [vmem:[%s505 + $0x10] sm:$0xff]
      %v509 = vld [vmem:[%s505 + $0x18] sm:$0xff]
      %v510 = vpack.c.bf16 %v507, %v506
      %v511 = vpack.c.bf16 %v509, %v508
      %v512 = vpack.c.bf16 %v499, %v497
      %v513 = vpack.c.bf16 %v500, %v498
      %v514 = vpack.c.bf16 %v503, %v501
      %v515 = vpack.c.bf16 %v504, %v502
      %s516 = scalar_lea.vmem %s4, 64
      %v517 = vld [vmem:[%s516] sm:$0xff]
      %v518 = vld [vmem:[%s516 + $0x8] sm:$0xff]
      %v519 = vld [vmem:[%s516 + $0x10] sm:$0xff]
      %v520 = vld [vmem:[%s516 + $0x18] sm:$0xff]
      %522 = vset.pattern.permute.xlu0 0
      %523 = vperm.xlu0 %522, %v517
      %v524 = vpop.permute.xlu0 %523
      %527 = vset.pattern.permute.xlu0 0
      %528 = vperm.xlu0 %527, %v518
      %v529 = vpop.permute.xlu0 %528
      %532 = vset.pattern.permute.xlu0 0
      %533 = vperm.xlu0 %532, %v519
      %v534 = vpop.permute.xlu0 %533
      %537 = vset.pattern.permute.xlu0 0
      %538 = vperm.xlu0 %537, %v520
      %v539 = vpop.permute.xlu0 %538
      %v542 = vsel %vm437, %v510, 0
      %v545 = vsel %vm437, %v511, 0
      %547 = vmatprep.subr.bf16.mxu0 %v513
      %548 = vmatpush1.bf16.msra.mxu0 %v512
      %549 = vmatprep.subr.bf16.mxu0 %v515
      %550 = vmatpush1.bf16.msra.mxu0 %v514
      %551 = vmatprep.subr.bf16.mxu0 0
      %552 = vmatpush1.bf16.msra.mxu0 0
      %553 = vmatprep.subr.bf16.mxu0 0
      %554 = vmatpush1.bf16.msra.mxu0 0
      %555 = vmatprep.subr.bf16.mxu0 0
      %556 = vmatpush1.bf16.msra.mxu0 0
      %557 = vmatprep.subr.bf16.mxu0 0
      %558 = vmatpush1.bf16.msra.mxu0 0
      %559 = vmatprep.subr.bf16.mxu0 0
      %560 = vmatpush1.bf16.msra.mxu0 0
      %561 = vmatprep.subr.bf16.mxu0 0
      %562 = vmatpush1.bf16.msra.mxu0 0
      %563 = vmatprep.subr.bf16.mxu0 0
      %564 = vmatpush1.bf16.msra.mxu0 0
      %565 = vmatprep.subr.bf16.mxu0 0
      %566 = vmatpush1.bf16.msra.mxu0 0
      %567 = vmatprep.subr.bf16.mxu0 0
      %568 = vmatpush1.bf16.msra.mxu0 0
      %569 = vmatprep.subr.bf16.mxu0 0
      %570 = vmatpush1.bf16.msra.mxu0 0
      %571 = vmatprep.subr.bf16.mxu0 0
      %572 = vmatpush1.bf16.msra.mxu0 0
      %573 = vmatprep.subr.bf16.mxu0 0
      %574 = vmatpush1.bf16.msra.mxu0 0
      %575 = vmatprep.subr.bf16.mxu0 0
      %576 = vmatpush1.bf16.msra.mxu0 0
      %577 = vmatprep.subr.bf16.mxu0 0
      %578 = vmatpush1.bf16.msra.mxu0 0
      %579 = vmatprep.mubr.bf16.mxu0 0
      %580 = vmatmul.mubr.bf16.gmra.mrb[0].mxu0 %v542
      %v581 = vpop.f32.mrb[0].mxu0
      %v582 = vadd.f32 %v524, %v581
      %v583 = vpop.f32.mrb[0].mxu0
      %v584 = vadd.f32 %v524, %v583
      %v585 = vpop.f32.mrb[0].mxu0
      %v586 = vadd.f32 %v529, %v585
      %v587 = vpop.f32.mrb[0].mxu0
      %v588 = vadd.f32 %v529, %v587
      %589 = vmatprep.mubr.bf16.mxu0 0
      %590 = vmatmul.mubr.bf16.gmra.mrb[0].mxu0 %v545
      %v591 = vpop.f32.mrb[0].mxu0
      %v592 = vadd.f32 %v534, %v591
      %v593 = vpop.f32.mrb[0].mxu0
      %v594 = vadd.f32 %v534, %v593
      %v595 = vpop.f32.mrb[0].mxu0
      %v596 = vadd.f32 %v539, %v595
      %v597 = vpop.f32.mrb[0].mxu0
      %v598 = vadd.f32 %v539, %v597
      %599 = vdwg.mxu0
      %v600 = vtanh.pop %v582
      %v601 = vtanh.pop %v584
      %v602 = vtanh.pop %v586
      %v603 = vtanh.pop %v588
      %v604 = vtanh.pop %v592
      %v605 = vtanh.pop %v594
      %v606 = vtanh.pop %v596
      %v607 = vtanh.pop %v598
      %v608 = vadd.f32 %v600, %v394
      %v609 = vadd.f32 %v601, %v395
      %v610 = vadd.f32 %v602, %v396
      %v611 = vadd.f32 %v603, %v397
      %v612 = vadd.f32 %v604, %v398
      %v613 = vadd.f32 %v605, %v399
      %v614 = vadd.f32 %v606, %v400
      %v615 = vadd.f32 %v607, %v401
      %s616 = scalar_lea.vmem %s2, 64
      %v617 = vld [vmem:[%s616] sm:$0xff]
      %v618 = vld [vmem:[%s616 + $0x8] sm:$0xff]
      %v619 = vld [vmem:[%s616 + $0x10] sm:$0xff]
      %v620 = vld [vmem:[%s616 + $0x18] sm:$0xff]
      %v621 = vpack.c.bf16 %v618, %v617
      %v622 = vpack.c.bf16 %v620, %v619
      %v623 = vpack.c.bf16 %v610, %v608
      %v624 = vpack.c.bf16 %v611, %v609
      %v625 = vpack.c.bf16 %v614, %v612
      %v626 = vpack.c.bf16 %v615, %v613
      %s627 = scalar_lea.vmem %s4, 96
      %v628 = vld [vmem:[%s627] sm:$0xff]
      %v629 = vld [vmem:[%s627 + $0x8] sm:$0xff]
      %v630 = vld [vmem:[%s627 + $0x10] sm:$0xff]
      %v631 = vld [vmem:[%s627 + $0x18] sm:$0xff]
      %633 = vset.pattern.permute.xlu0 0
      %634 = vperm.xlu0 %633, %v628
      %v635 = vpop.permute.xlu0 %634
      %638 = vset.pattern.permute.xlu0 0
      %639 = vperm.xlu0 %638, %v629
      %v640 = vpop.permute.xlu0 %639
      %643 = vset.pattern.permute.xlu0 0
      %644 = vperm.xlu0 %643, %v630
      %v645 = vpop.permute.xlu0 %644
      %648 = vset.pattern.permute.xlu0 0
      %649 = vperm.xlu0 %648, %v631
      %v650 = vpop.permute.xlu0 %649
      %v653 = vsel %vm437, %v621, 0
      %v656 = vsel %vm437, %v622, 0
      %658 = vmatprep.subr.bf16.mxu0 %v624
      %659 = vmatpush1.bf16.msra.mxu0 %v623
      %660 = vmatprep.subr.bf16.mxu0 %v626
      %661 = vmatpush1.bf16.msra.mxu0 %v625
      %662 = vmatprep.subr.bf16.mxu0 0
      %663 = vmatpush1.bf16.msra.mxu0 0
      %664 = vmatprep.subr.bf16.mxu0 0
      %665 = vmatpush1.bf16.msra.mxu0 0
      %666 = vmatprep.subr.bf16.mxu0 0
      %667 = vmatpush1.bf16.msra.mxu0 0
      %668 = vmatprep.subr.bf16.mxu0 0
      %669 = vmatpush1.bf16.msra.mxu0 0
      %670 = vmatprep.subr.bf16.mxu0 0
      %671 = vmatpush1.bf16.msra.mxu0 0
      %672 = vmatprep.subr.bf16.mxu0 0
      %673 = vmatpush1.bf16.msra.mxu0 0
      %674 = vmatprep.subr.bf16.mxu0 0
      %675 = vmatpush1.bf16.msra.mxu0 0
      %676 = vmatprep.subr.bf16.mxu0 0
      %677 = vmatpush1.bf16.msra.mxu0 0
      %678 = vmatprep.subr.bf16.mxu0 0
      %679 = vmatpush1.bf16.msra.mxu0 0
      %680 = vmatprep.subr.bf16.mxu0 0
      %681 = vmatpush1.bf16.msra.mxu0 0
      %682 = vmatprep.subr.bf16.mxu0 0
      %683 = vmatpush1.bf16.msra.mxu0 0
      %684 = vmatprep.subr.bf16.mxu0 0
      %685 = vmatpush1.bf16.msra.mxu0 0
      %686 = vmatprep.subr.bf16.mxu0 0
      %687 = vmatpush1.bf16.msra.mxu0 0
      %688 = vmatprep.subr.bf16.mxu0 0
      %689 = vmatpush1.bf16.msra.mxu0 0
      %690 = vmatprep.mubr.bf16.mxu0 0
      %691 = vmatmul.mubr.bf16.gmra.mrb[0].mxu0 %v653
      %v692 = vpop.f32.mrb[0].mxu0
      %v693 = vadd.f32 %v635, %v692
      %v694 = vpop.f32.mrb[0].mxu0
      %v695 = vadd.f32 %v635, %v694
      %v696 = vpop.f32.mrb[0].mxu0
      %v697 = vadd.f32 %v640, %v696
      %v698 = vpop.f32.mrb[0].mxu0
      %v699 = vadd.f32 %v640, %v698
      %700 = vmatprep.mubr.bf16.mxu0 0
      %701 = vmatmul.mubr.bf16.gmra.mrb[0].mxu0 %v656
      %v702 = vpop.f32.mrb[0].mxu0
      %v703 = vadd.f32 %v645, %v702
      %v704 = vpop.f32.mrb[0].mxu0
      %v705 = vadd.f32 %v645, %v704
      %v706 = vpop.f32.mrb[0].mxu0
      %v707 = vadd.f32 %v650, %v706
      %v708 = vpop.f32.mrb[0].mxu0
      %v709 = vadd.f32 %v650, %v708
      %710 = vdwg.mxu0
      %v711 = vtanh.pop %v693
      %v712 = vtanh.pop %v695
      %v713 = vtanh.pop %v697
      %v714 = vtanh.pop %v699
      %v715 = vtanh.pop %v703
      %v716 = vtanh.pop %v705
      %v717 = vtanh.pop %v707
      %v718 = vtanh.pop %v709
      %v719 = vadd.f32 %v711, %v497
      %v720 = vadd.f32 %v712, %v498
      %v721 = vadd.f32 %v713, %v499
      %v722 = vadd.f32 %v714, %v500
      %v723 = vadd.f32 %v715, %v501
      %v724 = vadd.f32 %v716, %v502
      %v725 = vadd.f32 %v717, %v503
      %v726 = vadd.f32 %v718, %v504
      %v727 = vld [vmem:[#allocation2] sm:$0x1]
      %729 = vset.pattern.permute.xlu0 0
      %730 = vperm.xlu0 %729, %v261
      %v731 = vpop.permute.xlu0 %730
      %734 = vset.pattern.permute.xlu0 0
      %735 = vperm.xlu0 %734, %v262
      %v736 = vpop.permute.xlu0 %735
      %739 = vset.pattern.permute.xlu0 0
      %740 = vperm.xlu0 %739, %v263
      %v741 = vpop.permute.xlu0 %740
      %744 = vset.pattern.permute.xlu0 0
      %745 = vperm.xlu0 %744, %v264
      %v746 = vpop.permute.xlu0 %745
      %v748 = vmul.f32 %v731, %v719
      %v749 = vmul.f32 %v731, %v720
      %v750 = vmul.f32 %v736, %v721
      %v751 = vmul.f32 %v736, %v722
      %v752 = vmul.f32 %v741, %v723
      %v753 = vmul.f32 %v741, %v724
      %v754 = vmul.f32 %v746, %v725
      %v755 = vmul.f32 %v746, %v726
      %v756 = vadd.f32 %v748, %v750
      %v757 = vadd.f32 %v756, %v752
      %v758 = vadd.f32 %v757, %v754
      %v759 = vrot.slane %v758, 4
      %v760 = vadd.f32 %v758, %v759
      %v761 = vrot.slane %v760, 2
      %v762 = vadd.f32 %v760, %v761
      %v763 = vrot.slane %v762, 1
      %v764 = vadd.f32 %v762, %v763
      %v765 = vadd.f32 %v749, %v751
      %v766 = vadd.f32 %v765, %v753
      %v767 = vadd.f32 %v766, %v755
      %v768 = vrot.slane %v767, 4
      %v769 = vadd.f32 %v767, %v768
      %v770 = vrot.slane %v769, 2
      %v771 = vadd.f32 %v769, %v770
      %v772 = vrot.slane %v771, 1
      %v773 = vadd.f32 %v771, %v772
      %775 = vset.pattern.permute.xlu0 0
      %776 = vperm.xlu0 %775, %v727
      %v777 = vpop.permute.xlu0 %776
      %v779 = vlaneseq
      %v780 = vshrl.u32 %v779, 7
      %v781 = vsub.s32 0, %v780
      %v782 = vrot.slane %v777, %v781
      %v783 = vadd.f32 %v764, %v782
      %v784 = vadd.f32 %v773, %v782
      %v787 = vcombine.low %v783, %v784
      %v789 = vunpack.c.l.s4 1966171168
      %v790 = vunpack.c.0.s8 %v789
      %v791 = vlaneseq
      %v792 = vshrl.u32 %v791, 7
      %v793 = vsub.s32 %v790, %v792
      %v794 = vrot.slane %v787, %v793
      %v796 = vunpack.c.l.s4 1966171168
      %v797 = vunpack.c.0.s8 %v796
      %v798 = vlaneseq
      %v799 = vshrl.u32 %v798, 7
      %v800 = vsub.s32 %v797, %v799
      %v801 = vrot.slane %v794, %v800
      %v803 = vlaneseq
      %vm804 = vcmp.ge.s32.totalorder %v803, 0
      %vm805 = vcmp.lt.s32.totalorder %v803, 256
      %vm806 = vmand %vm804, %vm805
      %807 = vst.msk [vmem:[%s253] sm:$0x3] %vm806, %v801
      %s808 = smul.u32 2, %s19
      %p809 = scmp.lt.s32.totalorder %s808, 3
      %s810 = scalar_select %p809, %s808, 3
      %s811 = scalar_lea.vmem %s6, %s810
      // Predicated region
      $region45: #{multilayer_net_forward.1} parent=43 // pred_check
        %p812 = pneg %p168
      $region46: #{multilayer_net_forward.1} parent=43 // pred_check_branch
        %814 = sbr.rel (%p812) target = $region48
      $region47: #{multilayer_net_forward.1} parent=43 // pred_region
        %s815 = smul.u32 2, %s19
      $region48: #{multilayer_net_forward.1} parent=43 // pred_fallthru
        _
    $region44: #{multilayer_net_forward.1} parent=5 // pred_fallthru
      _
    %p816 = scmp.le.s32.totalorder 2, %s14
    // Predicated region
    $region49: #{multilayer_net_forward.1} parent=5 // pred_check
      %p817 = pneg %p816
    $region50: #{multilayer_net_forward.1} parent=5 // pred_check_branch
      %819 = sbr.rel (%p817) target = $region52
    $region51: #{multilayer_net_forward.1} parent=5 // pred_region
      %s820 = ssub.s32 %s14, 2
      // Predicated region
      $region53: #{multilayer_net_forward.1} parent=51 // pred_check
        %p821 = pneg %p174
      $region54: #{multilayer_net_forward.1} parent=51 // pred_check_branch
        %823 = sbr.rel (%p821) target = $region56
      $region55: #{multilayer_net_forward.1} parent=51 // pred_region
        %s824 = smul.u32 2, %s20
        %p825 = scmp.lt.s32.totalorder %s824, 3
        %s826 = scalar_select %p825, %s824, 3
        %s827 = scalar_lea.vmem %s6, %s826
      $region56: #{multilayer_net_forward.1} parent=51 // pred_fallthru
        _
    $region52: #{multilayer_net_forward.1} parent=5 // pred_fallthru
      _
  $region6: #{multilayer_net_forward.1} parent=0 // loop_footer
    %s18 = sadd.s32 1, %s14
  $region7: #{multilayer_net_forward.1} parent=0 // loop_footer_branch
    %13 = sbr.rel target = $region3
  $region8: #{multilayer_net_forward.1} parent=0 // loop_exit
    _

</llo_original>
